<compile_context>
chip_gen: v5e
topology: v5e:2x2
jax: 0.10.0
libtpu: 0.0.40
codegen_flags: <defaults>
</compile_context>

<pallas_src>
import jax
import jax.numpy as jnp
from jax.experimental import pallas as pl
from jax.experimental.pallas import tpu as pltpu


def _round_up(v, m):
    return -(-v // m) * m


def _selection_matrix(h, w, ho, wo, dtype):
    """(H*W, Ho*Wo) 0/1 matrix: S[p*W*2? ...] -- S[src, dst]=1 iff src=(2p, 2q)."""
    src = jnp.arange(h * w)
    dst = jnp.arange(ho * wo)
    sel = ((src[:, None] // w == 2 * (dst[None, :] // wo))
           & (src[:, None] % w == 2 * (dst[None, :] % wo)))
    return sel.astype(dtype)


def _choose_sample_block(n, c, hw, howo, itemsize):
    """Samples per grid step: biggest block fitting a conservative VMEM budget.

    Counts the double-buffered input/output tiles (output includes the zero
    half), the f32 matmul result before the downcast, and leaves headroom for
    the S tile + compiler scratch inside the 32 MiB vmem limit.
    """
    cp = _round_up(c, 8)
    in_bytes = cp * _round_up(hw, 128) * itemsize          # per-sample input tile
    out_bytes = 2 * cp * _round_up(howo, 128) * itemsize   # incl. zero channel half
    acc_bytes = cp * _round_up(howo, 128) * 4               # f32 matmul result
    per_sample = 2 * in_bytes + 2 * out_bytes + acc_bytes   # in/out double-buffered
    budget = 20 * 1024 * 1024
    nb = max(1, min(n, budget // per_sample))
    nb = min(nb, 32)   # bounds the static per-sample unroll inside the kernel
    if n >= 4:
        # Keep >= 4 grid steps (v7x: 2 TensorCores x >= 2 pipeline stages each)
        # unless that would shrink blocks to almost nothing.
        target = max(1, n // 4)
        if target * c >= 32:
            nb = min(nb, target)
    return nb


def _downsample_a_kernel(x_ref, s_ref, o_ref):
    # x_ref: (nb, C, H*W)   s_ref: (H*W, Ho*Wo)   o_ref: (nb, 2, C, Ho*Wo)
    nb = x_ref.shape[0]
    s = s_ref[...]
    # Per-sample rank-2 matmuls keep everything 2D on the MXU and avoid an
    # in-kernel (nb*C, Ho*Wo) -> (nb, C, Ho*Wo) reshape, which would need a
    # sublane relayout whenever C % 8 != 0.  The kernel is memory-bound, so
    # the smaller matmul M-dim costs nothing measurable.
    for j in range(nb):                      # static unroll, nb <= 32
        y = jnp.dot(x_ref[j, :, :], s, preferred_element_type=jnp.float32)
        o_ref[j, 0, :, :] = y.astype(o_ref.dtype)
    # Zero channel half is written directly by the kernel: no wrapper concat,
    # so the real half is never re-read / re-written by XLA.
    o_ref[:, 1, :, :] = jnp.zeros((nb,) + o_ref.shape[2:], o_ref.dtype)


def downsample_a(x):
    """Pallas equivalent of DownsampleA.forward (stride=2), NCHW layout."""
    n, c, h, w = x.shape
    ho = (h - 1) // 2 + 1   # AvgPool2d(kernel_size=1, stride=2) output size
    wo = (w - 1) // 2 + 1
    hw, howo = h * w, ho * wo
    itemsize = jnp.dtype(x.dtype).itemsize

    xf = x.reshape(n, c, hw)                        # free row-major reshape
    sel = _selection_matrix(h, w, ho, wo, x.dtype)  # exact 0/1 selection, <=1 MiB
    nb = _choose_sample_block(n, c, hw, howo, itemsize)

    out = pl.pallas_call(
        _downsample_a_kernel,
        out_shape=jax.ShapeDtypeStruct((n, 2, c, howo), x.dtype),
        grid_spec=pltpu.PrefetchScalarGridSpec(
            num_scalar_prefetch=0,
            grid=(pl.cdiv(n, nb),),
            in_specs=[
                pl.BlockSpec((nb, c, hw), lambda i: (i, 0, 0)),
                pl.BlockSpec((hw, howo), lambda i: (0, 0)),
            ],
            out_specs=pl.BlockSpec((nb, 2, c, howo), lambda i: (i, 0, 0, 0)),
        ),
        compiler_params=pltpu.CompilerParams(
            dimension_semantics=("parallel",),
            vmem_limit_bytes=32 * 1024 * 1024,
        ),
        cost_estimate=pl.CostEstimate(
            flops=2 * n * c * hw * howo,
            transcendentals=0,
            bytes_accessed=(n * c * hw + n * 2 * c * howo + hw * howo) * itemsize,
        ),
    )(xf, sel)

    # (N, 2, C, Ho*Wo) -> (N, 2C, Ho, Wo): free row-major reshape; this IS the
    # torch.cat((x_ds, x_ds * 0), dim=1) layout.
    return out.reshape(n, 2 * c, ho, wo)


if __name__ == "__main__":
    key = jax.random.PRNGKey(0)
    x = jax.random.normal(key, (2, 4, 16, 16), dtype=jnp.float32)

    out = jax.block_until_ready(downsample_a(x))

    # Reference: strided spatial subsample then concat with zeros on channels.
    x_ds = x[:, :, ::2, ::2]
    ref = jnp.concatenate([x_ds, jnp.zeros_like(x_ds)], axis=1)

    assert out.shape == (2, 8, 8, 8), out.shape
    assert out.dtype == x.dtype
    assert jnp.allclose(out, ref, atol=1e-6), "mismatch vs reference"

    print("KERNEL_OK")
</pallas_src>

<mosaic_0001>
module attributes {stable_mosaic.version = 11 : i64} {
  func.func @_downsample_a_kernel(%arg0: i32, %arg1: memref<2x4x256xf32, #tpu.memory_space<vmem>>, %arg2: memref<256x64xf32, #tpu.memory_space<vmem>>, %arg3: memref<2x2x4x64xf32, #tpu.memory_space<vmem>>) attributes {dimension_semantics = [#tpu.dimension_semantics<parallel>], iteration_bounds = array<i64: 1>, scalar_prefetch = 0 : i64, scratch_operands = 0 : i64, tpu.core_type = #tpu.core_type<tc>, window_params = [{transform_indices = @transform_0, window_bounds = array<i64: 2, 4, 256>}, {pipeline_mode = #tpu.pipeline_mode<synchronous>, transform_indices = @transform_1, window_bounds = array<i64: 256, 64>}, {transform_indices = @transform_2, window_bounds = array<i64: 2, 2, 4, 64>}]} {
    %c0 = arith.constant 0 : index
    %c0_0 = arith.constant 0 : index
    %0 = vector.load %arg2[%c0, %c0_0] : memref<256x64xf32, #tpu.memory_space<vmem>>, vector<256x64xf32>
    %c0_1 = arith.constant 0 : index
    %c0_2 = arith.constant 0 : index
    %c0_3 = arith.constant 0 : index
    %1 = vector.load %arg1[%c0_1, %c0_2, %c0_3] : memref<2x4x256xf32, #tpu.memory_space<vmem>>, vector<1x4x256xf32>
    %2 = vector.shape_cast %1 : vector<1x4x256xf32> to vector<4x256xf32>
    %cst = arith.constant dense<0.000000e+00> : vector<4x64xf32>
    %3 = tpu.matmul %2, %0, %cst {dimension_numbers = #tpu.dot_dimension_numbers<[1], [0], [0], [1], [0, 0, 1, 1], [], []>} : vector<4x256xf32>, vector<256x64xf32>, vector<4x64xf32> -> vector<4x64xf32>
    %c0_4 = arith.constant 0 : index
    %c0_5 = arith.constant 0 : index
    %c0_6 = arith.constant 0 : index
    %c0_7 = arith.constant 0 : index
    %4 = vector.load %arg3[%c0_4, %c0_5, %c0_6, %c0_7] : memref<2x2x4x64xf32, #tpu.memory_space<vmem>>, vector<1x1x4x64xf32>
    %5 = vector.shape_cast %4 : vector<1x1x4x64xf32> to vector<4x64xf32>
    %6 = vector.shape_cast %3 : vector<4x64xf32> to vector<1x1x4x64xf32>
    tpu.vector_store %arg3[%c0_4, %c0_5, %c0_6, %c0_7], %6 {strides = array<i32>} : memref<2x2x4x64xf32, #tpu.memory_space<vmem>>, vector<1x1x4x64xf32>,
    %c1 = arith.constant 1 : index
    %c0_8 = arith.constant 0 : index
    %c0_9 = arith.constant 0 : index
    %7 = vector.load %arg1[%c1, %c0_8, %c0_9] : memref<2x4x256xf32, #tpu.memory_space<vmem>>, vector<1x4x256xf32>
    %8 = vector.shape_cast %7 : vector<1x4x256xf32> to vector<4x256xf32>
    %cst_10 = arith.constant dense<0.000000e+00> : vector<4x64xf32>
    %9 = tpu.matmul %8, %0, %cst_10 {dimension_numbers = #tpu.dot_dimension_numbers<[1], [0], [0], [1], [0, 0, 1, 1], [], []>} : vector<4x256xf32>, vector<256x64xf32>, vector<4x64xf32> -> vector<4x64xf32>
    %c1_11 = arith.constant 1 : index
    %c0_12 = arith.constant 0 : index
    %c0_13 = arith.constant 0 : index
    %c0_14 = arith.constant 0 : index
    %10 = vector.load %arg3[%c1_11, %c0_12, %c0_13, %c0_14] : memref<2x2x4x64xf32, #tpu.memory_space<vmem>>, vector<1x1x4x64xf32>
    %11 = vector.shape_cast %10 : vector<1x1x4x64xf32> to vector<4x64xf32>
    %12 = vector.shape_cast %9 : vector<4x64xf32> to vector<1x1x4x64xf32>
    tpu.vector_store %arg3[%c1_11, %c0_12, %c0_13, %c0_14], %12 {strides = array<i32>} : memref<2x2x4x64xf32, #tpu.memory_space<vmem>>, vector<1x1x4x64xf32>,
    %cst_15 = arith.constant 0.000000e+00 : f32
    %13 = vector.broadcast %cst_15 : f32 to vector<2x4x64xf32>
    %c0_16 = arith.constant 0 : index
    %c1_17 = arith.constant 1 : index
    %c0_18 = arith.constant 0 : index
    %c0_19 = arith.constant 0 : index
    %14 = vector.load %arg3[%c0_16, %c1_17, %c0_18, %c0_19] : memref<2x2x4x64xf32, #tpu.memory_space<vmem>>, vector<2x1x4x64xf32>
    %15 = vector.shape_cast %14 : vector<2x1x4x64xf32> to vector<2x4x64xf32>
    %16 = vector.shape_cast %13 : vector<2x4x64xf32> to vector<2x1x4x64xf32>
    tpu.vector_store %arg3[%c0_16, %c1_17, %c0_18, %c0_19], %16 {strides = array<i32>} : memref<2x2x4x64xf32, #tpu.memory_space<vmem>>, vector<2x1x4x64xf32>,
    return
  }
  func.func @transform_0(%arg0: i32) -> (i32, i32, i32) {
    %c0_i32 = arith.constant 0 : i32
    %c0_i32_0 = arith.constant 0 : i32
    %c0_i32_1 = arith.constant 0 : i32
    return %arg0, %c0_i32, %c0_i32_0 : i32, i32, i32
  }
  func.func @transform_1(%arg0: i32) -> (i32, i32) {
    %c0_i32 = arith.constant 0 : i32
    %c0_i32_0 = arith.constant 0 : i32
    %c0_i32_1 = arith.constant 0 : i32
    return %c0_i32, %c0_i32_0 : i32, i32
  }
  func.func @transform_2(%arg0: i32) -> (i32, i32, i32, i32) {
    %c0_i32 = arith.constant 0 : i32
    %c0_i32_0 = arith.constant 0 : i32
    %c0_i32_1 = arith.constant 0 : i32
    %c0_i32_2 = arith.constant 0 : i32
    return %arg0, %c0_i32, %c0_i32_0, %c0_i32_1 : i32, i32, i32, i32
  }
}

</mosaic_0001>

<llo_original>
// kernel: tpu_custom_call.1
$region0: #{tpu_custom_call.1}
  #allocation0 [shape = 'u32[]', space=smem, size = 0x4, offset = 0x4, fixed_abs, tag = 'smem constant byte address 0x4 - core index']
  #allocation1 [shape = 'u32[72,128]{1,0:T(1,128)}', space=vmem, size = 0x9000, scoped, tag = 'internal scratch']
  %s0 = inlined_call_operand.vmem [shape: f32[2,4,256], index: 0, kind: input, shape index: {}]
  %s1 = inlined_call_operand.vmem [shape: f32[256,64], index: 1, kind: input, shape index: {}]
  %s2 = inlined_call_operand.hbm [shape: f32[2,2,4,64], index: 2, kind: output, shape index: {}]
  %s3 = sld [smem:[#allocation0]]
  $region18: #{tpu_custom_call.1} parent=0
    _
  %s5 = ssub.s32 1, %s3
  %s6 = scalar_select 0, %s5, %s3
  $region1: #{tpu_custom_call.1} parent=0
    #allocation2 [shape = 'u8[8192]{0}', space=vmem, size = 0x2000, scoped, tag = 'output window, operand 0, single buffered']
    #allocation3 [shape = 's32[1]{0}', space=sflag, size = 0x4, scoped, tag = 'scoped memory for tpu_custom_call.1']
    %7 = vsyncpa [#allocation3], 0
    // Predicated region
    $region2: #{tpu_custom_call.1} parent=1 // pred_check
      _
    $region3: #{tpu_custom_call.1} parent=1 // pred_check_branch
      %9 = sbr.rel (0) target = $region5
    $region4: #{tpu_custom_call.1} parent=1 // pred_region
      _
    $region5: #{tpu_custom_call.1} parent=1 // pred_fallthru
      _
    // Predicated region
    $region6: #{tpu_custom_call.1} parent=1 // pred_check
      _
    $region7: #{tpu_custom_call.1} parent=1 // pred_check_branch
      %11 = sbr.rel (0) target = $region9
    $region8: #{tpu_custom_call.1} parent=1 // pred_region
      _
    $region9: #{tpu_custom_call.1} parent=1 // pred_fallthru
      _
    %v12 = vld [vmem:[%s1] sm:$0xff]
    %v13 = vld [vmem:[%s1 + $0x8] sm:$0xff]
    %v14 = vld [vmem:[%s1 + $0x10] sm:$0xff]
    %v15 = vld [vmem:[%s1 + $0x18] sm:$0xff]
    %v16 = vld [vmem:[%s1 + $0x20] sm:$0xff]
    %v17 = vld [vmem:[%s1 + $0x28] sm:$0xff]
    %v18 = vld [vmem:[%s1 + $0x30] sm:$0xff]
    %v19 = vld [vmem:[%s1 + $0x38] sm:$0xff]
    %v20 = vld [vmem:[%s1 + $0x40] sm:$0xff]
    %v21 = vld [vmem:[%s1 + $0x48] sm:$0xff]
    %v22 = vld [vmem:[%s1 + $0x50] sm:$0xff]
    %v23 = vld [vmem:[%s1 + $0x58] sm:$0xff]
    %v24 = vld [vmem:[%s1 + $0x60] sm:$0xff]
    %v25 = vld [vmem:[%s1 + $0x68] sm:$0xff]
    %v26 = vld [vmem:[%s1 + $0x70] sm:$0xff]
    %v27 = vld [vmem:[%s1 + $0x78] sm:$0xff]
    %v28 = vld [vmem:[%s1 + $0x80] sm:$0xff]
    %v29 = vld [vmem:[%s1 + $0x88] sm:$0xff]
    %v30 = vld [vmem:[%s1 + $0x90] sm:$0xff]
    %v31 = vld [vmem:[%s1 + $0x98] sm:$0xff]
    %v32 = vld [vmem:[%s1 + $0xa0] sm:$0xff]
    %v33 = vld [vmem:[%s1 + $0xa8] sm:$0xff]
    %v34 = vld [vmem:[%s1 + $0xb0] sm:$0xff]
    %v35 = vld [vmem:[%s1 + $0xb8] sm:$0xff]
    %v36 = vld [vmem:[%s1 + $0xc0] sm:$0xff]
    %v37 = vld [vmem:[%s1 + $0xc8] sm:$0xff]
    %v38 = vld [vmem:[%s1 + $0xd0] sm:$0xff]
    %v39 = vld [vmem:[%s1 + $0xd8] sm:$0xff]
    %v40 = vld [vmem:[%s1 + $0xe0] sm:$0xff]
    %v41 = vld [vmem:[%s1 + $0xe8] sm:$0xff]
    %v42 = vld [vmem:[%s1 + $0xf0] sm:$0xff]
    %v43 = vld [vmem:[%s1 + $0xf8] sm:$0xff]
    %v44 = vld [vmem:[%s0] sm:$0xff]
    %46 = vst [vmem:[#allocation1] ss:$2 sm:$0xff] %v44
    %v47 = vld.sshfl [vmem:[#allocation1] sm:$0xff pattern:$0x75316420]
    %v48 = vld.sshfl [vmem:[#allocation1 + $0x8] sm:$0xff pattern:$0x75316420]
    %51 = vmatpush.msra.mxu0 %v27
    %52 = vmatpush.msra.mxu0 %v26
    %53 = vmatpush.msra.mxu0 %v25
    %54 = vmatpush.msra.mxu0 %v24
    %55 = vmatpush.msra.mxu0 %v23
    %56 = vmatpush.msra.mxu0 %v22
    %57 = vmatpush.msra.mxu0 %v21
    %58 = vmatpush.msra.mxu0 %v20
    %59 = vmatpush.msra.mxu0 %v19
    %60 = vmatpush.msra.mxu0 %v18
    %61 = vmatpush.msra.mxu0 %v17
    %62 = vmatpush.msra.mxu0 %v16
    %63 = vmatpush.msra.mxu0 %v15
    %64 = vmatpush.msra.mxu0 %v14
    %65 = vmatpush.msra.mxu0 %v13
    %66 = vmatpush.msra.mxu0 %v12
    %67 = vmatmul.f32.gmra.mxu0 %v47
    %v68 = vpop.f32.mrf.mxu0
    %v69 = vadd.f32 0.0, %v68
    %70 = vdwg.mxu0
    %71 = vmatpush.msra.mxu0 %v43
    %72 = vmatpush.msra.mxu0 %v42
    %73 = vmatpush.msra.mxu0 %v41
    %74 = vmatpush.msra.mxu0 %v40
    %75 = vmatpush.msra.mxu0 %v39
    %76 = vmatpush.msra.mxu0 %v38
    %77 = vmatpush.msra.mxu0 %v37
    %78 = vmatpush.msra.mxu0 %v36
    %79 = vmatpush.msra.mxu0 %v35
    %80 = vmatpush.msra.mxu0 %v34
    %81 = vmatpush.msra.mxu0 %v33
    %82 = vmatpush.msra.mxu0 %v32
    %83 = vmatpush.msra.mxu0 %v31
    %84 = vmatpush.msra.mxu0 %v30
    %85 = vmatpush.msra.mxu0 %v29
    %86 = vmatpush.msra.mxu0 %v28
    %87 = vmatmul.f32.gmra.mxu0 %v48
    %v88 = vpop.f32.mrf.mxu0
    %v89 = vadd.f32 %v69, %v88
    %90 = vdwg.mxu0
    %vm91 = vcmask 519168
    %92 = vst.msk [vmem:[#allocation2] sm:$0xf] %vm91, %v89
    %s93 = scalar_lea.vmem %s0, 8
    %v94 = vld [vmem:[%s93] sm:$0xff]
    %96 = vst [vmem:[#allocation1] ss:$2 sm:$0xff] %v94
    %v97 = vld.sshfl [vmem:[#allocation1] sm:$0xff pattern:$0x75316420]
    %v98 = vld.sshfl [vmem:[#allocation1 + $0x8] sm:$0xff pattern:$0x75316420]
    %101 = vmatpush.msra.mxu0 %v27
    %102 = vmatpush.msra.mxu0 %v26
    %103 = vmatpush.msra.mxu0 %v25
    %104 = vmatpush.msra.mxu0 %v24
    %105 = vmatpush.msra.mxu0 %v23
    %106 = vmatpush.msra.mxu0 %v22
    %107 = vmatpush.msra.mxu0 %v21
    %108 = vmatpush.msra.mxu0 %v20
    %109 = vmatpush.msra.mxu0 %v19
    %110 = vmatpush.msra.mxu0 %v18
    %111 = vmatpush.msra.mxu0 %v17
    %112 = vmatpush.msra.mxu0 %v16
    %113 = vmatpush.msra.mxu0 %v15
    %114 = vmatpush.msra.mxu0 %v14
    %115 = vmatpush.msra.mxu0 %v13
    %116 = vmatpush.msra.mxu0 %v12
    %117 = vmatmul.f32.gmra.mxu0 %v97
    %v118 = vpop.f32.mrf.mxu0
    %v119 = vadd.f32 0.0, %v118
    %120 = vdwg.mxu0
    %121 = vmatpush.msra.mxu0 %v43
    %122 = vmatpush.msra.mxu0 %v42
    %123 = vmatpush.msra.mxu0 %v41
    %124 = vmatpush.msra.mxu0 %v40
    %125 = vmatpush.msra.mxu0 %v39
    %126 = vmatpush.msra.mxu0 %v38
    %127 = vmatpush.msra.mxu0 %v37
    %128 = vmatpush.msra.mxu0 %v36
    %129 = vmatpush.msra.mxu0 %v35
    %130 = vmatpush.msra.mxu0 %v34
    %131 = vmatpush.msra.mxu0 %v33
    %132 = vmatpush.msra.mxu0 %v32
    %133 = vmatpush.msra.mxu0 %v31
    %134 = vmatpush.msra.mxu0 %v30
    %135 = vmatpush.msra.mxu0 %v29
    %136 = vmatpush.msra.mxu0 %v28
    %137 = vmatmul.f32.gmra.mxu0 %v98
    %v138 = vpop.f32.mrf.mxu0
    %v139 = vadd.f32 %v119, %v138
    %140 = vdwg.mxu0
    %s141 = scalar_lea.vmem [#allocation2], 8
    %142 = vst.msk [vmem:[%s141] sm:$0xf] %vm91, %v139
    %s143 = scalar_lea.vmem [#allocation2], 4
    %144 = vst.msk [vmem:[%s143] sm:$0xf] %vm91, 0.0
    %145 = vst.msk [vmem:[%s143 + $0x8] sm:$0xf] %vm91, 0.0
    // Predicated region
    $region10: #{tpu_custom_call.1} parent=1 // pred_check
      _
    $region11: #{tpu_custom_call.1} parent=1 // pred_check_branch
      %147 = sbr.rel (0) target = $region13
    $region12: #{tpu_custom_call.1} parent=1 // pred_region
      %149 = vsyncadd [#allocation3], 0
      %s150 = sshll.u32 [#allocation2], 4
      %s151 = int_to_ptr.vmem [resolvable:$true] %s150
      %s152 = sshll.u32 %s2, 4
      %s153 = int_to_ptr.hbm [resolvable:$true] %s152
      %158 = dma.vmem_to_hbm [thread:$0]  %s151, 256, %s153, [#allocation3], 64, 64, 4
    $region13: #{tpu_custom_call.1} parent=1 // pred_fallthru
      _
    // Predicated region
    $region14: #{tpu_custom_call.1} parent=1 // pred_check
      _
    $region15: #{tpu_custom_call.1} parent=1 // pred_check_branch
      %160 = sbr.rel (0) target = $region17
    $region16: #{tpu_custom_call.1} parent=1 // pred_region
      %162 = dma.done [#allocation3], 256
    $region17: #{tpu_custom_call.1} parent=1 // pred_fallthru
      _
    %163 = vsyncpa [#allocation3], 1

</llo_original>
